<compile_context>
chip_gen: v5e
topology: v5e:2x2
jax: 0.10.0
libtpu: 0.0.40
codegen_flags: <defaults>
</compile_context>

<pallas_src>
import functools
import time

import jax
import jax.numpy as jnp
from jax import lax
from jax.experimental import pallas as pl
from jax.experimental.pallas import tpu as pltpu


# --------------------------------------------------------------------------
# Kernels
# --------------------------------------------------------------------------
def _embed_pool_dma_kernel(ids_ref, table_hbm, out_ref, stage, sem):
    """Large-vocab path: bulk DMA row-gather + mean pool + L2 normalize.

    ids_ref:   [B*S]       int32  (SMEM, scalar-prefetched, flattened ids)
    table_hbm: [V, Dp]     f32    (HBM ref, memory_space=pl.ANY)
    out_ref:   [bm, Dp]    f32    (VMEM output block for this batch block)
    stage:     [bm, S, Dp] f32    (VMEM staging buffer for gathered rows)
    sem:       [bm, S]     DMA semaphores (one per gathered row)
    """
    g = pl.program_id(0)
    bm, S, Dp = stage.shape
    base = g * (bm * S)

    # Fire-and-forget: issue all bm*S row gathers so they are in flight
    # concurrently (amortizes HBM/DMA latency).  All scalar id reads happen
    # before the first wait.
    # TODO(synk): for large S, switch this static unroll to a
    # lax.fori_loop(..., unroll=True) over chunks of the staging buffer.
    copies = []
    for b in range(bm):
        for s in range(S):
            idx = ids_ref[base + b * S + s]              # scalar SMEM read
            cp = pltpu.make_async_copy(
                table_hbm.at[pl.ds(idx, 1), :],          # one (1, Dp) table row
                stage.at[b, pl.ds(s, 1), :],
                sem.at[b, s],
            )
            cp.start()
            copies.append(cp)
    for cp in copies:                                    # wait after ALL starts
        cp.wait()

    rows = stage[...]                                    # (bm, S, Dp) f32
    pooled = jnp.sum(rows, axis=1) * (1.0 / S)           # mean pool -> (bm, Dp)
    sq = jnp.sum(pooled * pooled, axis=-1, keepdims=True)
    out_ref[...] = (pooled * lax.rsqrt(sq + 1e-12)).astype(out_ref.dtype)


def _embed_pool_vmem_kernel(ids_ref, table_ref, out_ref, *, seq_len):
    """Small-table fast path: table VMEM-resident, direct dynamic-index gather.

    ids_ref:   [B*S]    int32 (SMEM, scalar-prefetched)
    table_ref: [V, Dp]  f32   (VMEM, whole table)
    out_ref:   [bm, Dp] f32   (VMEM output block)
    """
    g = pl.program_id(0)
    bm, Dp = out_ref.shape
    base = g * (bm * seq_len)
    inv_s = 1.0 / seq_len

    rows = []
    for b in range(bm):
        acc = jnp.zeros((1, Dp), jnp.float32)
        for s in range(seq_len):
            idx = ids_ref[base + b * seq_len + s]
            acc = acc + table_ref[pl.ds(idx, 1), :]      # dynamic (1, Dp) load
        rows.append(acc)
    pooled = jnp.concatenate(rows, axis=0) * inv_s        # (bm, Dp)
    sq = jnp.sum(pooled * pooled, axis=-1, keepdims=True)
    out_ref[...] = (pooled * lax.rsqrt(sq + 1e-12)).astype(out_ref.dtype)


# --------------------------------------------------------------------------
# Wrapper
# --------------------------------------------------------------------------
def pallas_embed(token_ids: jax.Array, table_padded: jax.Array, *,
                 block_b: int = 8,
                 vmem_table_limit_bytes: int = 8 * 1024 * 1024,
                 force_dma: bool = False) -> jax.Array:
    """token_ids: [B, S] int, table_padded: [V, Dp] f32 (Dp % 128 == 0).

    Returns [B, Dp] f32 mean-pooled, L2-normalized embeddings (caller slices
    off any column padding).
    """
    B, S = token_ids.shape
    V, Dp = table_padded.shape
    assert Dp % 128 == 0, "table must be column-padded to a multiple of 128"

    bm = block_b
    Bp = ((B + bm - 1) // bm) * bm

    # Clamp ids so a bad token id can never turn into an OOB gather / DMA.
    ids = jnp.clip(token_ids.astype(jnp.int32), 0, V - 1)
    if Bp != B:
        ids = jnp.pad(ids, ((0, Bp - B), (0, 0)))        # pad rows gather id 0
    ids_flat = ids.reshape(-1)                           # 1-D SMEM layout

    out_spec = pl.BlockSpec((bm, Dp), lambda g, ids_r: (g, 0))
    table_bytes = V * Dp * table_padded.dtype.itemsize

    if (not force_dma) and table_bytes <= vmem_table_limit_bytes:
        # Small-table fast path: whole table VMEM-resident, no per-row DMAs.
        kernel = functools.partial(_embed_pool_vmem_kernel, seq_len=S)
        grid_spec = pltpu.PrefetchScalarGridSpec(
            num_scalar_prefetch=1,                       # ids -> SMEM
            grid=(Bp // bm,),
            in_specs=[pl.BlockSpec((V, Dp), lambda g, ids_r: (0, 0))],
            out_specs=out_spec,
        )
    else:
        # Large-vocab path: table stays in HBM, bulk row gather by DMA.
        # Staging buffer is bm*S*Dp*4 bytes; keep it well under scoped VMEM
        # (64 MiB physical on v7x, 128 MiB on v5e/v6e).
        kernel = _embed_pool_dma_kernel
        grid_spec = pltpu.PrefetchScalarGridSpec(
            num_scalar_prefetch=1,
            grid=(Bp // bm,),
            in_specs=[pl.BlockSpec(memory_space=pl.ANY)],
            out_specs=out_spec,
            scratch_shapes=[
                pltpu.VMEM((bm, S, Dp), jnp.float32),
                pltpu.SemaphoreType.DMA((bm, S)),
            ],
        )

    out = pl.pallas_call(
        kernel,
        out_shape=jax.ShapeDtypeStruct((Bp, Dp), jnp.float32),
        grid_spec=grid_spec,
        # TODO(synk): on v7x use pltpu.CORE_PARALLEL (or pl.core_map over
        # create_tensorcore_mesh) so the batch axis really splits across the
        # two TensorCores; plain "parallel" kept here for cross-gen portability.
        compiler_params=pltpu.CompilerParams(
            dimension_semantics=("parallel",)),
    )(ids_flat, table_padded)

    return out[:B]


# --------------------------------------------------------------------------
# JAX/Pallas analogue of APIEmbeddingModel
# --------------------------------------------------------------------------
class APIEmbeddingModelPallas:
    """The abstract `embed` is realized as table-row gather + mean-pool +
    L2-normalize (the Pallas kernels).  APIEmbeddingModel.forward's retry loop
    stays as host-side control flow."""

    def __init__(self, vocab_size: int, dim: int,
                 api_key: str | None = None, num_retries: int | None = None):
        assert num_retries is None or num_retries > 0, \
            "num_retries must be a positive integer"
        self._api_key = api_key
        self._num_retries = num_retries
        self._dim = dim
        # Deterministic synthetic "API model" parameters.
        key = jax.random.PRNGKey(0)
        self.table = (jax.random.normal(key, (vocab_size, dim),
                                        dtype=jnp.float32) * 0.02)
        # Column-pad to a lane-dense width ONCE (not inside the jitted path).
        dp = max(128, ((dim + 127) // 128) * 128)
        self._table_padded = (self.table if dp == dim
                              else jnp.pad(self.table, ((0, 0), (0, dp - dim))))
        # TODO(synk): storing the padded table in bf16 (accumulating in f32)
        # would halve HBM bytes per gathered row; kept f32 for exactness here.
        self._embed_fn = jax.jit(pallas_embed)

    # ---- EmbeddingModel.embed ------------------------------------------
    def embed(self, data: jax.Array, input_type: str) -> list[list[float]]:
        out = self._embed_fn(data, self._table_padded)
        out = jax.block_until_ready(out)[:, :self._dim]
        return [list(map(float, row)) for row in jax.device_get(out)]

    # ---- APIEmbeddingModel.forward (retry loop) ------------------------
    def forward(self, batch: dict) -> list[list[float]]:
        num_tries = 0
        result = None
        while not self._num_retries or num_tries < self._num_retries:
            try:
                num_tries += 1
                result = self.embed(batch["text"], batch["input_type"][0])
                break
            except Exception:
                # TODO(synk): rate-limit / service-error sleep-and-retry of the
                # API client has no Pallas equivalent; host-side control only.
                time.sleep(0)
                raise
        return result

    @property
    def api_key(self):
        return self._api_key

    @property
    def num_retries(self):
        return self._num_retries if self._num_retries else float("inf")


if __name__ == "__main__":
    # Small but TPU-friendly shapes: B multiple of 8, D a full 128-lane width.
    B, S, V, D = 8, 8, 256, 128
    key = jax.random.PRNGKey(0)
    k_ids, _ = jax.random.split(key)
    token_ids = jax.random.randint(k_ids, (B, S), 0, V, dtype=jnp.int32)

    model = APIEmbeddingModelPallas(vocab_size=V, dim=D,
                                    api_key="synthetic", num_retries=3)
    batch = {"text": token_ids, "input_type": ["query"]}

    embeddings = model.forward(batch)        # exercises the VMEM fast path

    # Plain-JAX reference.
    ref = jnp.take(model.table, token_ids, axis=0).mean(axis=1)
    ref = ref * lax.rsqrt(jnp.sum(ref * ref, axis=-1, keepdims=True) + 1e-12)

    got = jnp.asarray(embeddings, dtype=jnp.float32)
    assert got.shape == (B, D)
    assert jnp.allclose(got, ref, atol=1e-4, rtol=1e-4), \
        float(jnp.max(jnp.abs(got - ref)))

    # Also exercise the large-vocab bulk-DMA gather path explicitly.
    got_dma = pallas_embed(token_ids, model._table_padded, force_dma=True)
    got_dma = jax.block_until_ready(got_dma)[:, :D]
    assert got_dma.shape == (B, D)
    assert jnp.allclose(got_dma, ref, atol=1e-4, rtol=1e-4), \
        float(jnp.max(jnp.abs(got_dma - ref)))

    jax.block_until_ready(got_dma)
    print("KERNEL_OK")
</pallas_src>

<mosaic_0001>
module attributes {stable_mosaic.version = 11 : i64} {
  func.func @_embed_pool_vmem_kernel(%arg0: i32, %arg1: memref<64xi32, #tpu.memory_space<smem>>, %arg2: memref<256x128xf32, #tpu.memory_space<vmem>>, %arg3: memref<8x128xf32, #tpu.memory_space<vmem>>) attributes {dimension_semantics = [#tpu.dimension_semantics<parallel>], iteration_bounds = array<i64: 1>, scalar_prefetch = 1 : i64, scratch_operands = 0 : i64, tpu.core_type = #tpu.core_type<tc>, window_params = [{pipeline_mode = #tpu.pipeline_mode<synchronous>, transform_indices = @transform_0, window_bounds = array<i64: 256, 128>}, {transform_indices = @transform_1, window_bounds = array<i64: 8, 128>}]} {
    %c64_i32 = arith.constant 64 : i32
    %0 = arith.muli %arg0, %c64_i32 : i32
    %cst = arith.constant 0.000000e+00 : f32
    %1 = vector.broadcast %cst : f32 to vector<1x128xf32>
    %c0_i32 = arith.constant 0 : i32
    %2 = arith.addi %0, %c0_i32 : i32
    %c0_i32_0 = arith.constant 0 : i32
    %3 = arith.addi %2, %c0_i32_0 : i32
    %4 = arith.index_cast %3 : i32 to index
    %5 = memref.load %arg1[%4] : memref<64xi32, #tpu.memory_space<smem>>
    %6 = arith.index_cast %5 : i32 to index
    %c0 = arith.constant 0 : index
    %7 = vector.load %arg2[%6, %c0] : memref<256x128xf32, #tpu.memory_space<vmem>>, vector<1x128xf32>
    %8 = arith.addf %1, %7 : vector<1x128xf32>
    %c0_i32_1 = arith.constant 0 : i32
    %9 = arith.addi %0, %c0_i32_1 : i32
    %c1_i32 = arith.constant 1 : i32
    %10 = arith.addi %9, %c1_i32 : i32
    %11 = arith.index_cast %10 : i32 to index
    %12 = memref.load %arg1[%11] : memref<64xi32, #tpu.memory_space<smem>>
    %13 = arith.index_cast %12 : i32 to index
    %c0_2 = arith.constant 0 : index
    %14 = vector.load %arg2[%13, %c0_2] : memref<256x128xf32, #tpu.memory_space<vmem>>, vector<1x128xf32>
    %15 = arith.addf %8, %14 : vector<1x128xf32>
    %c0_i32_3 = arith.constant 0 : i32
    %16 = arith.addi %0, %c0_i32_3 : i32
    %c2_i32 = arith.constant 2 : i32
    %17 = arith.addi %16, %c2_i32 : i32
    %18 = arith.index_cast %17 : i32 to index
    %19 = memref.load %arg1[%18] : memref<64xi32, #tpu.memory_space<smem>>
    %20 = arith.index_cast %19 : i32 to index
    %c0_4 = arith.constant 0 : index
    %21 = vector.load %arg2[%20, %c0_4] : memref<256x128xf32, #tpu.memory_space<vmem>>, vector<1x128xf32>
    %22 = arith.addf %15, %21 : vector<1x128xf32>
    %c0_i32_5 = arith.constant 0 : i32
    %23 = arith.addi %0, %c0_i32_5 : i32
    %c3_i32 = arith.constant 3 : i32
    %24 = arith.addi %23, %c3_i32 : i32
    %25 = arith.index_cast %24 : i32 to index
    %26 = memref.load %arg1[%25] : memref<64xi32, #tpu.memory_space<smem>>
    %27 = arith.index_cast %26 : i32 to index
    %c0_6 = arith.constant 0 : index
    %28 = vector.load %arg2[%27, %c0_6] : memref<256x128xf32, #tpu.memory_space<vmem>>, vector<1x128xf32>
    %29 = arith.addf %22, %28 : vector<1x128xf32>
    %c0_i32_7 = arith.constant 0 : i32
    %30 = arith.addi %0, %c0_i32_7 : i32
    %c4_i32 = arith.constant 4 : i32
    %31 = arith.addi %30, %c4_i32 : i32
    %32 = arith.index_cast %31 : i32 to index
    %33 = memref.load %arg1[%32] : memref<64xi32, #tpu.memory_space<smem>>
    %34 = arith.index_cast %33 : i32 to index
    %c0_8 = arith.constant 0 : index
    %35 = vector.load %arg2[%34, %c0_8] : memref<256x128xf32, #tpu.memory_space<vmem>>, vector<1x128xf32>
    %36 = arith.addf %29, %35 : vector<1x128xf32>
    %c0_i32_9 = arith.constant 0 : i32
    %37 = arith.addi %0, %c0_i32_9 : i32
    %c5_i32 = arith.constant 5 : i32
    %38 = arith.addi %37, %c5_i32 : i32
    %39 = arith.index_cast %38 : i32 to index
    %40 = memref.load %arg1[%39] : memref<64xi32, #tpu.memory_space<smem>>
    %41 = arith.index_cast %40 : i32 to index
    %c0_10 = arith.constant 0 : index
    %42 = vector.load %arg2[%41, %c0_10] : memref<256x128xf32, #tpu.memory_space<vmem>>, vector<1x128xf32>
    %43 = arith.addf %36, %42 : vector<1x128xf32>
    %c0_i32_11 = arith.constant 0 : i32
    %44 = arith.addi %0, %c0_i32_11 : i32
    %c6_i32 = arith.constant 6 : i32
    %45 = arith.addi %44, %c6_i32 : i32
    %46 = arith.index_cast %45 : i32 to index
    %47 = memref.load %arg1[%46] : memref<64xi32, #tpu.memory_space<smem>>
    %48 = arith.index_cast %47 : i32 to index
    %c0_12 = arith.constant 0 : index
    %49 = vector.load %arg2[%48, %c0_12] : memref<256x128xf32, #tpu.memory_space<vmem>>, vector<1x128xf32>
    %50 = arith.addf %43, %49 : vector<1x128xf32>
    %c0_i32_13 = arith.constant 0 : i32
    %51 = arith.addi %0, %c0_i32_13 : i32
    %c7_i32 = arith.constant 7 : i32
    %52 = arith.addi %51, %c7_i32 : i32
    %53 = arith.index_cast %52 : i32 to index
    %54 = memref.load %arg1[%53] : memref<64xi32, #tpu.memory_space<smem>>
    %55 = arith.index_cast %54 : i32 to index
    %c0_14 = arith.constant 0 : index
    %56 = vector.load %arg2[%55, %c0_14] : memref<256x128xf32, #tpu.memory_space<vmem>>, vector<1x128xf32>
    %57 = arith.addf %50, %56 : vector<1x128xf32>
    %cst_15 = arith.constant 0.000000e+00 : f32
    %58 = vector.broadcast %cst_15 : f32 to vector<1x128xf32>
    %c8_i32 = arith.constant 8 : i32
    %59 = arith.addi %0, %c8_i32 : i32
    %c0_i32_16 = arith.constant 0 : i32
    %60 = arith.addi %59, %c0_i32_16 : i32
    %61 = arith.index_cast %60 : i32 to index
    %62 = memref.load %arg1[%61] : memref<64xi32, #tpu.memory_space<smem>>
    %63 = arith.index_cast %62 : i32 to index
    %c0_17 = arith.constant 0 : index
    %64 = vector.load %arg2[%63, %c0_17] : memref<256x128xf32, #tpu.memory_space<vmem>>, vector<1x128xf32>
    %65 = arith.addf %58, %64 : vector<1x128xf32>
    %c8_i32_18 = arith.constant 8 : i32
    %66 = arith.addi %0, %c8_i32_18 : i32
    %c1_i32_19 = arith.constant 1 : i32
    %67 = arith.addi %66, %c1_i32_19 : i32
    %68 = arith.index_cast %67 : i32 to index
    %69 = memref.load %arg1[%68] : memref<64xi32, #tpu.memory_space<smem>>
    %70 = arith.index_cast %69 : i32 to index
    %c0_20 = arith.constant 0 : index
    %71 = vector.load %arg2[%70, %c0_20] : memref<256x128xf32, #tpu.memory_space<vmem>>, vector<1x128xf32>
    %72 = arith.addf %65, %71 : vector<1x128xf32>
    %c8_i32_21 = arith.constant 8 : i32
    %73 = arith.addi %0, %c8_i32_21 : i32
    %c2_i32_22 = arith.constant 2 : i32
    %74 = arith.addi %73, %c2_i32_22 : i32
    %75 = arith.index_cast %74 : i32 to index
    %76 = memref.load %arg1[%75] : memref<64xi32, #tpu.memory_space<smem>>
    %77 = arith.index_cast %76 : i32 to index
    %c0_23 = arith.constant 0 : index
    %78 = vector.load %arg2[%77, %c0_23] : memref<256x128xf32, #tpu.memory_space<vmem>>, vector<1x128xf32>
    %79 = arith.addf %72, %78 : vector<1x128xf32>
    %c8_i32_24 = arith.constant 8 : i32
    %80 = arith.addi %0, %c8_i32_24 : i32
    %c3_i32_25 = arith.constant 3 : i32
    %81 = arith.addi %80, %c3_i32_25 : i32
    %82 = arith.index_cast %81 : i32 to index
    %83 = memref.load %arg1[%82] : memref<64xi32, #tpu.memory_space<smem>>
    %84 = arith.index_cast %83 : i32 to index
    %c0_26 = arith.constant 0 : index
    %85 = vector.load %arg2[%84, %c0_26] : memref<256x128xf32, #tpu.memory_space<vmem>>, vector<1x128xf32>
    %86 = arith.addf %79, %85 : vector<1x128xf32>
    %c8_i32_27 = arith.constant 8 : i32
    %87 = arith.addi %0, %c8_i32_27 : i32
    %c4_i32_28 = arith.constant 4 : i32
    %88 = arith.addi %87, %c4_i32_28 : i32
    %89 = arith.index_cast %88 : i32 to index
    %90 = memref.load %arg1[%89] : memref<64xi32, #tpu.memory_space<smem>>
    %91 = arith.index_cast %90 : i32 to index
    %c0_29 = arith.constant 0 : index
    %92 = vector.load %arg2[%91, %c0_29] : memref<256x128xf32, #tpu.memory_space<vmem>>, vector<1x128xf32>
    %93 = arith.addf %86, %92 : vector<1x128xf32>
    %c8_i32_30 = arith.constant 8 : i32
    %94 = arith.addi %0, %c8_i32_30 : i32
    %c5_i32_31 = arith.constant 5 : i32
    %95 = arith.addi %94, %c5_i32_31 : i32
    %96 = arith.index_cast %95 : i32 to index
    %97 = memref.load %arg1[%96] : memref<64xi32, #tpu.memory_space<smem>>
    %98 = arith.index_cast %97 : i32 to index
    %c0_32 = arith.constant 0 : index
    %99 = vector.load %arg2[%98, %c0_32] : memref<256x128xf32, #tpu.memory_space<vmem>>, vector<1x128xf32>
    %100 = arith.addf %93, %99 : vector<1x128xf32>
    %c8_i32_33 = arith.constant 8 : i32
    %101 = arith.addi %0, %c8_i32_33 : i32
    %c6_i32_34 = arith.constant 6 : i32
    %102 = arith.addi %101, %c6_i32_34 : i32
    %103 = arith.index_cast %102 : i32 to index
    %104 = memref.load %arg1[%103] : memref<64xi32, #tpu.memory_space<smem>>
    %105 = arith.index_cast %104 : i32 to index
    %c0_35 = arith.constant 0 : index
    %106 = vector.load %arg2[%105, %c0_35] : memref<256x128xf32, #tpu.memory_space<vmem>>, vector<1x128xf32>
    %107 = arith.addf %100, %106 : vector<1x128xf32>
    %c8_i32_36 = arith.constant 8 : i32
    %108 = arith.addi %0, %c8_i32_36 : i32
    %c7_i32_37 = arith.constant 7 : i32
    %109 = arith.addi %108, %c7_i32_37 : i32
    %110 = arith.index_cast %109 : i32 to index
    %111 = memref.load %arg1[%110] : memref<64xi32, #tpu.memory_space<smem>>
    %112 = arith.index_cast %111 : i32 to index
    %c0_38 = arith.constant 0 : index
    %113 = vector.load %arg2[%112, %c0_38] : memref<256x128xf32, #tpu.memory_space<vmem>>, vector<1x128xf32>
    %114 = arith.addf %107, %113 : vector<1x128xf32>
    %cst_39 = arith.constant 0.000000e+00 : f32
    %115 = vector.broadcast %cst_39 : f32 to vector<1x128xf32>
    %c16_i32 = arith.constant 16 : i32
    %116 = arith.addi %0, %c16_i32 : i32
    %c0_i32_40 = arith.constant 0 : i32
    %117 = arith.addi %116, %c0_i32_40 : i32
    %118 = arith.index_cast %117 : i32 to index
    %119 = memref.load %arg1[%118] : memref<64xi32, #tpu.memory_space<smem>>
    %120 = arith.index_cast %119 : i32 to index
    %c0_41 = arith.constant 0 : index
    %121 = vector.load %arg2[%120, %c0_41] : memref<256x128xf32, #tpu.memory_space<vmem>>, vector<1x128xf32>
    %122 = arith.addf %115, %121 : vector<1x128xf32>
    %c16_i32_42 = arith.constant 16 : i32
    %123 = arith.addi %0, %c16_i32_42 : i32
    %c1_i32_43 = arith.constant 1 : i32
    %124 = arith.addi %123, %c1_i32_43 : i32
    %125 = arith.index_cast %124 : i32 to index
    %126 = memref.load %arg1[%125] : memref<64xi32, #tpu.memory_space<smem>>
    %127 = arith.index_cast %126 : i32 to index
    %c0_44 = arith.constant 0 : index
    %128 = vector.load %arg2[%127, %c0_44] : memref<256x128xf32, #tpu.memory_space<vmem>>, vector<1x128xf32>
    %129 = arith.addf %122, %128 : vector<1x128xf32>
    %c16_i32_45 = arith.constant 16 : i32
    %130 = arith.addi %0, %c16_i32_45 : i32
    %c2_i32_46 = arith.constant 2 : i32
    %131 = arith.addi %130, %c2_i32_46 : i32
    %132 = arith.index_cast %131 : i32 to index
    %133 = memref.load %arg1[%132] : memref<64xi32, #tpu.memory_space<smem>>
    %134 = arith.index_cast %133 : i32 to index
    %c0_47 = arith.constant 0 : index
    %135 = vector.load %arg2[%134, %c0_47] : memref<256x128xf32, #tpu.memory_space<vmem>>, vector<1x128xf32>
    %136 = arith.addf %129, %135 : vector<1x128xf32>
    %c16_i32_48 = arith.constant 16 : i32
    %137 = arith.addi %0, %c16_i32_48 : i32
    %c3_i32_49 = arith.constant 3 : i32
    %138 = arith.addi %137, %c3_i32_49 : i32
    %139 = arith.index_cast %138 : i32 to index
    %140 = memref.load %arg1[%139] : memref<64xi32, #tpu.memory_space<smem>>
    %141 = arith.index_cast %140 : i32 to index
    %c0_50 = arith.constant 0 : index
    %142 = vector.load %arg2[%141, %c0_50] : memref<256x128xf32, #tpu.memory_space<vmem>>, vector<1x128xf32>
    %143 = arith.addf %136, %142 : vector<1x128xf32>
    %c16_i32_51 = arith.constant 16 : i32
    %144 = arith.addi %0, %c16_i32_51 : i32
    %c4_i32_52 = arith.constant 4 : i32
    %145 = arith.addi %144, %c4_i32_52 : i32
    %146 = arith.index_cast %145 : i32 to index
    %147 = memref.load %arg1[%146] : memref<64xi32, #tpu.memory_space<smem>>
    %148 = arith.index_cast %147 : i32 to index
    %c0_53 = arith.constant 0 : index
    %149 = vector.load %arg2[%148, %c0_53] : memref<256x128xf32, #tpu.memory_space<vmem>>, vector<1x128xf32>
    %150 = arith.addf %143, %149 : vector<1x128xf32>
    %c16_i32_54 = arith.constant 16 : i32
    %151 = arith.addi %0, %c16_i32_54 : i32
    %c5_i32_55 = arith.constant 5 : i32
    %152 = arith.addi %151, %c5_i32_55 : i32
    %153 = arith.index_cast %152 : i32 to index
    %154 = memref.load %arg1[%153] : memref<64xi32, #tpu.memory_space<smem>>
    %155 = arith.index_cast %154 : i32 to index
    %c0_56 = arith.constant 0 : index
    %156 = vector.load %arg2[%155, %c0_56] : memref<256x128xf32, #tpu.memory_space<vmem>>, vector<1x128xf32>
    %157 = arith.addf %150, %156 : vector<1x128xf32>
    %c16_i32_57 = arith.constant 16 : i32
    %158 = arith.addi %0, %c16_i32_57 : i32
    %c6_i32_58 = arith.constant 6 : i32
    %159 = arith.addi %158, %c6_i32_58 : i32
    %160 = arith.index_cast %159 : i32 to index
    %161 = memref.load %arg1[%160] : memref<64xi32, #tpu.memory_space<smem>>
    %162 = arith.index_cast %161 : i32 to index
    %c0_59 = arith.constant 0 : index
    %163 = vector.load %arg2[%162, %c0_59] : memref<256x128xf32, #tpu.memory_space<vmem>>, vector<1x128xf32>
    %164 = arith.addf %157, %163 : vector<1x128xf32>
    %c16_i32_60 = arith.constant 16 : i32
    %165 = arith.addi %0, %c16_i32_60 : i32
    %c7_i32_61 = arith.constant 7 : i32
    %166 = arith.addi %165, %c7_i32_61 : i32
    %167 = arith.index_cast %166 : i32 to index
    %168 = memref.load %arg1[%167] : memref<64xi32, #tpu.memory_space<smem>>
    %169 = arith.index_cast %168 : i32 to index
    %c0_62 = arith.constant 0 : index
    %170 = vector.load %arg2[%169, %c0_62] : memref<256x128xf32, #tpu.memory_space<vmem>>, vector<1x128xf32>
    %171 = arith.addf %164, %170 : vector<1x128xf32>
    %cst_63 = arith.constant 0.000000e+00 : f32
    %172 = vector.broadcast %cst_63 : f32 to vector<1x128xf32>
    %c24_i32 = arith.constant 24 : i32
    %173 = arith.addi %0, %c24_i32 : i32
    %c0_i32_64 = arith.constant 0 : i32
    %174 = arith.addi %173, %c0_i32_64 : i32
    %175 = arith.index_cast %174 : i32 to index
    %176 = memref.load %arg1[%175] : memref<64xi32, #tpu.memory_space<smem>>
    %177 = arith.index_cast %176 : i32 to index
    %c0_65 = arith.constant 0 : index
    %178 = vector.load %arg2[%177, %c0_65] : memref<256x128xf32, #tpu.memory_space<vmem>>, vector<1x128xf32>
    %179 = arith.addf %172, %178 : vector<1x128xf32>
    %c24_i32_66 = arith.constant 24 : i32
    %180 = arith.addi %0, %c24_i32_66 : i32
    %c1_i32_67 = arith.constant 1 : i32
    %181 = arith.addi %180, %c1_i32_67 : i32
    %182 = arith.index_cast %181 : i32 to index
    %183 = memref.load %arg1[%182] : memref<64xi32, #tpu.memory_space<smem>>
    %184 = arith.index_cast %183 : i32 to index
    %c0_68 = arith.constant 0 : index
    %185 = vector.load %arg2[%184, %c0_68] : memref<256x128xf32, #tpu.memory_space<vmem>>, vector<1x128xf32>
    %186 = arith.addf %179, %185 : vector<1x128xf32>
    %c24_i32_69 = arith.constant 24 : i32
    %187 = arith.addi %0, %c24_i32_69 : i32
    %c2_i32_70 = arith.constant 2 : i32
    %188 = arith.addi %187, %c2_i32_70 : i32
    %189 = arith.index_cast %188 : i32 to index
    %190 = memref.load %arg1[%189] : memref<64xi32, #tpu.memory_space<smem>>
    %191 = arith.index_cast %190 : i32 to index
    %c0_71 = arith.constant 0 : index
    %192 = vector.load %arg2[%191, %c0_71] : memref<256x128xf32, #tpu.memory_space<vmem>>, vector<1x128xf32>
    %193 = arith.addf %186, %192 : vector<1x128xf32>
    %c24_i32_72 = arith.constant 24 : i32
    %194 = arith.addi %0, %c24_i32_72 : i32
    %c3_i32_73 = arith.constant 3 : i32
    %195 = arith.addi %194, %c3_i32_73 : i32
    %196 = arith.index_cast %195 : i32 to index
    %197 = memref.load %arg1[%196] : memref<64xi32, #tpu.memory_space<smem>>
    %198 = arith.index_cast %197 : i32 to index
    %c0_74 = arith.constant 0 : index
    %199 = vector.load %arg2[%198, %c0_74] : memref<256x128xf32, #tpu.memory_space<vmem>>, vector<1x128xf32>
    %200 = arith.addf %193, %199 : vector<1x128xf32>
    %c24_i32_75 = arith.constant 24 : i32
    %201 = arith.addi %0, %c24_i32_75 : i32
    %c4_i32_76 = arith.constant 4 : i32
    %202 = arith.addi %201, %c4_i32_76 : i32
    %203 = arith.index_cast %202 : i32 to index
    %204 = memref.load %arg1[%203] : memref<64xi32, #tpu.memory_space<smem>>
    %205 = arith.index_cast %204 : i32 to index
    %c0_77 = arith.constant 0 : index
    %206 = vector.load %arg2[%205, %c0_77] : memref<256x128xf32, #tpu.memory_space<vmem>>, vector<1x128xf32>
    %207 = arith.addf %200, %206 : vector<1x128xf32>
    %c24_i32_78 = arith.constant 24 : i32
    %208 = arith.addi %0, %c24_i32_78 : i32
    %c5_i32_79 = arith.constant 5 : i32
    %209 = arith.addi %208, %c5_i32_79 : i32
    %210 = arith.index_cast %209 : i32 to index
    %211 = memref.load %arg1[%210] : memref<64xi32, #tpu.memory_space<smem>>
    %212 = arith.index_cast %211 : i32 to index
    %c0_80 = arith.constant 0 : index
    %213 = vector.load %arg2[%212, %c0_80] : memref<256x128xf32, #tpu.memory_space<vmem>>, vector<1x128xf32>
    %214 = arith.addf %207, %213 : vector<1x128xf32>
    %c24_i32_81 = arith.constant 24 : i32
    %215 = arith.addi %0, %c24_i32_81 : i32
    %c6_i32_82 = arith.constant 6 : i32
    %216 = arith.addi %215, %c6_i32_82 : i32
    %217 = arith.index_cast %216 : i32 to index
    %218 = memref.load %arg1[%217] : memref<64xi32, #tpu.memory_space<smem>>
    %219 = arith.index_cast %218 : i32 to index
    %c0_83 = arith.constant 0 : index
    %220 = vector.load %arg2[%219, %c0_83] : memref<256x128xf32, #tpu.memory_space<vmem>>, vector<1x128xf32>
    %221 = arith.addf %214, %220 : vector<1x128xf32>
    %c24_i32_84 = arith.constant 24 : i32
    %222 = arith.addi %0, %c24_i32_84 : i32
    %c7_i32_85 = arith.constant 7 : i32
    %223 = arith.addi %222, %c7_i32_85 : i32
    %224 = arith.index_cast %223 : i32 to index
    %225 = memref.load %arg1[%224] : memref<64xi32, #tpu.memory_space<smem>>
    %226 = arith.index_cast %225 : i32 to index
    %c0_86 = arith.constant 0 : index
    %227 = vector.load %arg2[%226, %c0_86] : memref<256x128xf32, #tpu.memory_space<vmem>>, vector<1x128xf32>
    %228 = arith.addf %221, %227 : vector<1x128xf32>
    %cst_87 = arith.constant 0.000000e+00 : f32
    %229 = vector.broadcast %cst_87 : f32 to vector<1x128xf32>
    %c32_i32 = arith.constant 32 : i32
    %230 = arith.addi %0, %c32_i32 : i32
    %c0_i32_88 = arith.constant 0 : i32
    %231 = arith.addi %230, %c0_i32_88 : i32
    %232 = arith.index_cast %231 : i32 to index
    %233 = memref.load %arg1[%232] : memref<64xi32, #tpu.memory_space<smem>>
    %234 = arith.index_cast %233 : i32 to index
    %c0_89 = arith.constant 0 : index
    %235 = vector.load %arg2[%234, %c0_89] : memref<256x128xf32, #tpu.memory_space<vmem>>, vector<1x128xf32>
    %236 = arith.addf %229, %235 : vector<1x128xf32>
    %c32_i32_90 = arith.constant 32 : i32
    %237 = arith.addi %0, %c32_i32_90 : i32
    %c1_i32_91 = arith.constant 1 : i32
    %238 = arith.addi %237, %c1_i32_91 : i32
    %239 = arith.index_cast %238 : i32 to index
    %240 = memref.load %arg1[%239] : memref<64xi32, #tpu.memory_space<smem>>
    %241 = arith.index_cast %240 : i32 to index
    %c0_92 = arith.constant 0 : index
    %242 = vector.load %arg2[%241, %c0_92] : memref<256x128xf32, #tpu.memory_space<vmem>>, vector<1x128xf32>
    %243 = arith.addf %236, %242 : vector<1x128xf32>
    %c32_i32_93 = arith.constant 32 : i32
    %244 = arith.addi %0, %c32_i32_93 : i32
    %c2_i32_94 = arith.constant 2 : i32
    %245 = arith.addi %244, %c2_i32_94 : i32
    %246 = arith.index_cast %245 : i32 to index
    %247 = memref.load %arg1[%246] : memref<64xi32, #tpu.memory_space<smem>>
    %248 = arith.index_cast %247 : i32 to index
    %c0_95 = arith.constant 0 : index
    %249 = vector.load %arg2[%248, %c0_95] : memref<256x128xf32, #tpu.memory_space<vmem>>, vector<1x128xf32>
    %250 = arith.addf %243, %249 : vector<1x128xf32>
    %c32_i32_96 = arith.constant 32 : i32
    %251 = arith.addi %0, %c32_i32_96 : i32
    %c3_i32_97 = arith.constant 3 : i32
    %252 = arith.addi %251, %c3_i32_97 : i32
    %253 = arith.index_cast %252 : i32 to index
    %254 = memref.load %arg1[%253] : memref<64xi32, #tpu.memory_space<smem>>
    %255 = arith.index_cast %254 : i32 to index
    %c0_98 = arith.constant 0 : index
    %256 = vector.load %arg2[%255, %c0_98] : memref<256x128xf32, #tpu.memory_space<vmem>>, vector<1x128xf32>
    %257 = arith.addf %250, %256 : vector<1x128xf32>
    %c32_i32_99 = arith.constant 32 : i32
    %258 = arith.addi %0, %c32_i32_99 : i32
    %c4_i32_100 = arith.constant 4 : i32
    %259 = arith.addi %258, %c4_i32_100 : i32
    %260 = arith.index_cast %259 : i32 to index
    %261 = memref.load %arg1[%260] : memref<64xi32, #tpu.memory_space<smem>>
    %262 = arith.index_cast %261 : i32 to index
    %c0_101 = arith.constant 0 : index
    %263 = vector.load %arg2[%262, %c0_101] : memref<256x128xf32, #tpu.memory_space<vmem>>, vector<1x128xf32>
    %264 = arith.addf %257, %263 : vector<1x128xf32>
    %c32_i32_102 = arith.constant 32 : i32
    %265 = arith.addi %0, %c32_i32_102 : i32
    %c5_i32_103 = arith.constant 5 : i32
    %266 = arith.addi %265, %c5_i32_103 : i32
    %267 = arith.index_cast %266 : i32 to index
    %268 = memref.load %arg1[%267] : memref<64xi32, #tpu.memory_space<smem>>
    %269 = arith.index_cast %268 : i32 to index
    %c0_104 = arith.constant 0 : index
    %270 = vector.load %arg2[%269, %c0_104] : memref<256x128xf32, #tpu.memory_space<vmem>>, vector<1x128xf32>
    %271 = arith.addf %264, %270 : vector<1x128xf32>
    %c32_i32_105 = arith.constant 32 : i32
    %272 = arith.addi %0, %c32_i32_105 : i32
    %c6_i32_106 = arith.constant 6 : i32
    %273 = arith.addi %272, %c6_i32_106 : i32
    %274 = arith.index_cast %273 : i32 to index
    %275 = memref.load %arg1[%274] : memref<64xi32, #tpu.memory_space<smem>>
    %276 = arith.index_cast %275 : i32 to index
    %c0_107 = arith.constant 0 : index
    %277 = vector.load %arg2[%276, %c0_107] : memref<256x128xf32, #tpu.memory_space<vmem>>, vector<1x128xf32>
    %278 = arith.addf %271, %277 : vector<1x128xf32>
    %c32_i32_108 = arith.constant 32 : i32
    %279 = arith.addi %0, %c32_i32_108 : i32
    %c7_i32_109 = arith.constant 7 : i32
    %280 = arith.addi %279, %c7_i32_109 : i32
    %281 = arith.index_cast %280 : i32 to index
    %282 = memref.load %arg1[%281] : memref<64xi32, #tpu.memory_space<smem>>
    %283 = arith.index_cast %282 : i32 to index
    %c0_110 = arith.constant 0 : index
    %284 = vector.load %arg2[%283, %c0_110] : memref<256x128xf32, #tpu.memory_space<vmem>>, vector<1x128xf32>
    %285 = arith.addf %278, %284 : vector<1x128xf32>
    %cst_111 = arith.constant 0.000000e+00 : f32
    %286 = vector.broadcast %cst_111 : f32 to vector<1x128xf32>
    %c40_i32 = arith.constant 40 : i32
    %287 = arith.addi %0, %c40_i32 : i32
    %c0_i32_112 = arith.constant 0 : i32
    %288 = arith.addi %287, %c0_i32_112 : i32
    %289 = arith.index_cast %288 : i32 to index
    %290 = memref.load %arg1[%289] : memref<64xi32, #tpu.memory_space<smem>>
    %291 = arith.index_cast %290 : i32 to index
    %c0_113 = arith.constant 0 : index
    %292 = vector.load %arg2[%291, %c0_113] : memref<256x128xf32, #tpu.memory_space<vmem>>, vector<1x128xf32>
    %293 = arith.addf %286, %292 : vector<1x128xf32>
    %c40_i32_114 = arith.constant 40 : i32
    %294 = arith.addi %0, %c40_i32_114 : i32
    %c1_i32_115 = arith.constant 1 : i32
    %295 = arith.addi %294, %c1_i32_115 : i32
    %296 = arith.index_cast %295 : i32 to index
    %297 = memref.load %arg1[%296] : memref<64xi32, #tpu.memory_space<smem>>
    %298 = arith.index_cast %297 : i32 to index
    %c0_116 = arith.constant 0 : index
    %299 = vector.load %arg2[%298, %c0_116] : memref<256x128xf32, #tpu.memory_space<vmem>>, vector<1x128xf32>
    %300 = arith.addf %293, %299 : vector<1x128xf32>
    %c40_i32_117 = arith.constant 40 : i32
    %301 = arith.addi %0, %c40_i32_117 : i32
    %c2_i32_118 = arith.constant 2 : i32
    %302 = arith.addi %301, %c2_i32_118 : i32
    %303 = arith.index_cast %302 : i32 to index
    %304 = memref.load %arg1[%303] : memref<64xi32, #tpu.memory_space<smem>>
    %305 = arith.index_cast %304 : i32 to index
    %c0_119 = arith.constant 0 : index
    %306 = vector.load %arg2[%305, %c0_119] : memref<256x128xf32, #tpu.memory_space<vmem>>, vector<1x128xf32>
    %307 = arith.addf %300, %306 : vector<1x128xf32>
    %c40_i32_120 = arith.constant 40 : i32
    %308 = arith.addi %0, %c40_i32_120 : i32
    %c3_i32_121 = arith.constant 3 : i32
    %309 = arith.addi %308, %c3_i32_121 : i32
    %310 = arith.index_cast %309 : i32 to index
    %311 = memref.load %arg1[%310] : memref<64xi32, #tpu.memory_space<smem>>
    %312 = arith.index_cast %311 : i32 to index
    %c0_122 = arith.constant 0 : index
    %313 = vector.load %arg2[%312, %c0_122] : memref<256x128xf32, #tpu.memory_space<vmem>>, vector<1x128xf32>
    %314 = arith.addf %307, %313 : vector<1x128xf32>
    %c40_i32_123 = arith.constant 40 : i32
    %315 = arith.addi %0, %c40_i32_123 : i32
    %c4_i32_124 = arith.constant 4 : i32
    %316 = arith.addi %315, %c4_i32_124 : i32
    %317 = arith.index_cast %316 : i32 to index
    %318 = memref.load %arg1[%317] : memref<64xi32, #tpu.memory_space<smem>>
    %319 = arith.index_cast %318 : i32 to index
    %c0_125 = arith.constant 0 : index
    %320 = vector.load %arg2[%319, %c0_125] : memref<256x128xf32, #tpu.memory_space<vmem>>, vector<1x128xf32>
    %321 = arith.addf %314, %320 : vector<1x128xf32>
    %c40_i32_126 = arith.constant 40 : i32
    %322 = arith.addi %0, %c40_i32_126 : i32
    %c5_i32_127 = arith.constant 5 : i32
    %323 = arith.addi %322, %c5_i32_127 : i32
    %324 = arith.index_cast %323 : i32 to index
    %325 = memref.load %arg1[%324] : memref<64xi32, #tpu.memory_space<smem>>
    %326 = arith.index_cast %325 : i32 to index
    %c0_128 = arith.constant 0 : index
    %327 = vector.load %arg2[%326, %c0_128] : memref<256x128xf32, #tpu.memory_space<vmem>>, vector<1x128xf32>
    %328 = arith.addf %321, %327 : vector<1x128xf32>
    %c40_i32_129 = arith.constant 40 : i32
    %329 = arith.addi %0, %c40_i32_129 : i32
    %c6_i32_130 = arith.constant 6 : i32
    %330 = arith.addi %329, %c6_i32_130 : i32
    %331 = arith.index_cast %330 : i32 to index
    %332 = memref.load %arg1[%331] : memref<64xi32, #tpu.memory_space<smem>>
    %333 = arith.index_cast %332 : i32 to index
    %c0_131 = arith.constant 0 : index
    %334 = vector.load %arg2[%333, %c0_131] : memref<256x128xf32, #tpu.memory_space<vmem>>, vector<1x128xf32>
    %335 = arith.addf %328, %334 : vector<1x128xf32>
    %c40_i32_132 = arith.constant 40 : i32
    %336 = arith.addi %0, %c40_i32_132 : i32
    %c7_i32_133 = arith.constant 7 : i32
    %337 = arith.addi %336, %c7_i32_133 : i32
    %338 = arith.index_cast %337 : i32 to index
    %339 = memref.load %arg1[%338] : memref<64xi32, #tpu.memory_space<smem>>
    %340 = arith.index_cast %339 : i32 to index
    %c0_134 = arith.constant 0 : index
    %341 = vector.load %arg2[%340, %c0_134] : memref<256x128xf32, #tpu.memory_space<vmem>>, vector<1x128xf32>
    %342 = arith.addf %335, %341 : vector<1x128xf32>
    %cst_135 = arith.constant 0.000000e+00 : f32
    %343 = vector.broadcast %cst_135 : f32 to vector<1x128xf32>
    %c48_i32 = arith.constant 48 : i32
    %344 = arith.addi %0, %c48_i32 : i32
    %c0_i32_136 = arith.constant 0 : i32
    %345 = arith.addi %344, %c0_i32_136 : i32
    %346 = arith.index_cast %345 : i32 to index
    %347 = memref.load %arg1[%346] : memref<64xi32, #tpu.memory_space<smem>>
    %348 = arith.index_cast %347 : i32 to index
    %c0_137 = arith.constant 0 : index
    %349 = vector.load %arg2[%348, %c0_137] : memref<256x128xf32, #tpu.memory_space<vmem>>, vector<1x128xf32>
    %350 = arith.addf %343, %349 : vector<1x128xf32>
    %c48_i32_138 = arith.constant 48 : i32
    %351 = arith.addi %0, %c48_i32_138 : i32
    %c1_i32_139 = arith.constant 1 : i32
    %352 = arith.addi %351, %c1_i32_139 : i32
    %353 = arith.index_cast %352 : i32 to index
    %354 = memref.load %arg1[%353] : memref<64xi32, #tpu.memory_space<smem>>
    %355 = arith.index_cast %354 : i32 to index
    %c0_140 = arith.constant 0 : index
    %356 = vector.load %arg2[%355, %c0_140] : memref<256x128xf32, #tpu.memory_space<vmem>>, vector<1x128xf32>
    %357 = arith.addf %350, %356 : vector<1x128xf32>
    %c48_i32_141 = arith.constant 48 : i32
    %358 = arith.addi %0, %c48_i32_141 : i32
    %c2_i32_142 = arith.constant 2 : i32
    %359 = arith.addi %358, %c2_i32_142 : i32
    %360 = arith.index_cast %359 : i32 to index
    %361 = memref.load %arg1[%360] : memref<64xi32, #tpu.memory_space<smem>>
    %362 = arith.index_cast %361 : i32 to index
    %c0_143 = arith.constant 0 : index
    %363 = vector.load %arg2[%362, %c0_143] : memref<256x128xf32, #tpu.memory_space<vmem>>, vector<1x128xf32>
    %364 = arith.addf %357, %363 : vector<1x128xf32>
    %c48_i32_144 = arith.constant 48 : i32
    %365 = arith.addi %0, %c48_i32_144 : i32
    %c3_i32_145 = arith.constant 3 : i32
    %366 = arith.addi %365, %c3_i32_145 : i32
    %367 = arith.index_cast %366 : i32 to index
    %368 = memref.load %arg1[%367] : memref<64xi32, #tpu.memory_space<smem>>
    %369 = arith.index_cast %368 : i32 to index
    %c0_146 = arith.constant 0 : index
    %370 = vector.load %arg2[%369, %c0_146] : memref<256x128xf32, #tpu.memory_space<vmem>>, vector<1x128xf32>
    %371 = arith.addf %364, %370 : vector<1x128xf32>
    %c48_i32_147 = arith.constant 48 : i32
    %372 = arith.addi %0, %c48_i32_147 : i32
    %c4_i32_148 = arith.constant 4 : i32
    %373 = arith.addi %372, %c4_i32_148 : i32
    %374 = arith.index_cast %373 : i32 to index
    %375 = memref.load %arg1[%374] : memref<64xi32, #tpu.memory_space<smem>>
    %376 = arith.index_cast %375 : i32 to index
    %c0_149 = arith.constant 0 : index
    %377 = vector.load %arg2[%376, %c0_149] : memref<256x128xf32, #tpu.memory_space<vmem>>, vector<1x128xf32>
    %378 = arith.addf %371, %377 : vector<1x128xf32>
    %c48_i32_150 = arith.constant 48 : i32
    %379 = arith.addi %0, %c48_i32_150 : i32
    %c5_i32_151 = arith.constant 5 : i32
    %380 = arith.addi %379, %c5_i32_151 : i32
    %381 = arith.index_cast %380 : i32 to index
    %382 = memref.load %arg1[%381] : memref<64xi32, #tpu.memory_space<smem>>
    %383 = arith.index_cast %382 : i32 to index
    %c0_152 = arith.constant 0 : index
    %384 = vector.load %arg2[%383, %c0_152] : memref<256x128xf32, #tpu.memory_space<vmem>>, vector<1x128xf32>
    %385 = arith.addf %378, %384 : vector<1x128xf32>
    %c48_i32_153 = arith.constant 48 : i32
    %386 = arith.addi %0, %c48_i32_153 : i32
    %c6_i32_154 = arith.constant 6 : i32
    %387 = arith.addi %386, %c6_i32_154 : i32
    %388 = arith.index_cast %387 : i32 to index
    %389 = memref.load %arg1[%388] : memref<64xi32, #tpu.memory_space<smem>>
    %390 = arith.index_cast %389 : i32 to index
    %c0_155 = arith.constant 0 : index
    %391 = vector.load %arg2[%390, %c0_155] : memref<256x128xf32, #tpu.memory_space<vmem>>, vector<1x128xf32>
    %392 = arith.addf %385, %391 : vector<1x128xf32>
    %c48_i32_156 = arith.constant 48 : i32
    %393 = arith.addi %0, %c48_i32_156 : i32
    %c7_i32_157 = arith.constant 7 : i32
    %394 = arith.addi %393, %c7_i32_157 : i32
    %395 = arith.index_cast %394 : i32 to index
    %396 = memref.load %arg1[%395] : memref<64xi32, #tpu.memory_space<smem>>
    %397 = arith.index_cast %396 : i32 to index
    %c0_158 = arith.constant 0 : index
    %398 = vector.load %arg2[%397, %c0_158] : memref<256x128xf32, #tpu.memory_space<vmem>>, vector<1x128xf32>
    %399 = arith.addf %392, %398 : vector<1x128xf32>
    %cst_159 = arith.constant 0.000000e+00 : f32
    %400 = vector.broadcast %cst_159 : f32 to vector<1x128xf32>
    %c56_i32 = arith.constant 56 : i32
    %401 = arith.addi %0, %c56_i32 : i32
    %c0_i32_160 = arith.constant 0 : i32
    %402 = arith.addi %401, %c0_i32_160 : i32
    %403 = arith.index_cast %402 : i32 to index
    %404 = memref.load %arg1[%403] : memref<64xi32, #tpu.memory_space<smem>>
    %405 = arith.index_cast %404 : i32 to index
    %c0_161 = arith.constant 0 : index
    %406 = vector.load %arg2[%405, %c0_161] : memref<256x128xf32, #tpu.memory_space<vmem>>, vector<1x128xf32>
    %407 = arith.addf %400, %406 : vector<1x128xf32>
    %c56_i32_162 = arith.constant 56 : i32
    %408 = arith.addi %0, %c56_i32_162 : i32
    %c1_i32_163 = arith.constant 1 : i32
    %409 = arith.addi %408, %c1_i32_163 : i32
    %410 = arith.index_cast %409 : i32 to index
    %411 = memref.load %arg1[%410] : memref<64xi32, #tpu.memory_space<smem>>
    %412 = arith.index_cast %411 : i32 to index
    %c0_164 = arith.constant 0 : index
    %413 = vector.load %arg2[%412, %c0_164] : memref<256x128xf32, #tpu.memory_space<vmem>>, vector<1x128xf32>
    %414 = arith.addf %407, %413 : vector<1x128xf32>
    %c56_i32_165 = arith.constant 56 : i32
    %415 = arith.addi %0, %c56_i32_165 : i32
    %c2_i32_166 = arith.constant 2 : i32
    %416 = arith.addi %415, %c2_i32_166 : i32
    %417 = arith.index_cast %416 : i32 to index
    %418 = memref.load %arg1[%417] : memref<64xi32, #tpu.memory_space<smem>>
    %419 = arith.index_cast %418 : i32 to index
    %c0_167 = arith.constant 0 : index
    %420 = vector.load %arg2[%419, %c0_167] : memref<256x128xf32, #tpu.memory_space<vmem>>, vector<1x128xf32>
    %421 = arith.addf %414, %420 : vector<1x128xf32>
    %c56_i32_168 = arith.constant 56 : i32
    %422 = arith.addi %0, %c56_i32_168 : i32
    %c3_i32_169 = arith.constant 3 : i32
    %423 = arith.addi %422, %c3_i32_169 : i32
    %424 = arith.index_cast %423 : i32 to index
    %425 = memref.load %arg1[%424] : memref<64xi32, #tpu.memory_space<smem>>
    %426 = arith.index_cast %425 : i32 to index
    %c0_170 = arith.constant 0 : index
    %427 = vector.load %arg2[%426, %c0_170] : memref<256x128xf32, #tpu.memory_space<vmem>>, vector<1x128xf32>
    %428 = arith.addf %421, %427 : vector<1x128xf32>
    %c56_i32_171 = arith.constant 56 : i32
    %429 = arith.addi %0, %c56_i32_171 : i32
    %c4_i32_172 = arith.constant 4 : i32
    %430 = arith.addi %429, %c4_i32_172 : i32
    %431 = arith.index_cast %430 : i32 to index
    %432 = memref.load %arg1[%431] : memref<64xi32, #tpu.memory_space<smem>>
    %433 = arith.index_cast %432 : i32 to index
    %c0_173 = arith.constant 0 : index
    %434 = vector.load %arg2[%433, %c0_173] : memref<256x128xf32, #tpu.memory_space<vmem>>, vector<1x128xf32>
    %435 = arith.addf %428, %434 : vector<1x128xf32>
    %c56_i32_174 = arith.constant 56 : i32
    %436 = arith.addi %0, %c56_i32_174 : i32
    %c5_i32_175 = arith.constant 5 : i32
    %437 = arith.addi %436, %c5_i32_175 : i32
    %438 = arith.index_cast %437 : i32 to index
    %439 = memref.load %arg1[%438] : memref<64xi32, #tpu.memory_space<smem>>
    %440 = arith.index_cast %439 : i32 to index
    %c0_176 = arith.constant 0 : index
    %441 = vector.load %arg2[%440, %c0_176] : memref<256x128xf32, #tpu.memory_space<vmem>>, vector<1x128xf32>
    %442 = arith.addf %435, %441 : vector<1x128xf32>
    %c56_i32_177 = arith.constant 56 : i32
    %443 = arith.addi %0, %c56_i32_177 : i32
    %c6_i32_178 = arith.constant 6 : i32
    %444 = arith.addi %443, %c6_i32_178 : i32
    %445 = arith.index_cast %444 : i32 to index
    %446 = memref.load %arg1[%445] : memref<64xi32, #tpu.memory_space<smem>>
    %447 = arith.index_cast %446 : i32 to index
    %c0_179 = arith.constant 0 : index
    %448 = vector.load %arg2[%447, %c0_179] : memref<256x128xf32, #tpu.memory_space<vmem>>, vector<1x128xf32>
    %449 = arith.addf %442, %448 : vector<1x128xf32>
    %c56_i32_180 = arith.constant 56 : i32
    %450 = arith.addi %0, %c56_i32_180 : i32
    %c7_i32_181 = arith.constant 7 : i32
    %451 = arith.addi %450, %c7_i32_181 : i32
    %452 = arith.index_cast %451 : i32 to index
    %453 = memref.load %arg1[%452] : memref<64xi32, #tpu.memory_space<smem>>
    %454 = arith.index_cast %453 : i32 to index
    %c0_182 = arith.constant 0 : index
    %455 = vector.load %arg2[%454, %c0_182] : memref<256x128xf32, #tpu.memory_space<vmem>>, vector<1x128xf32>
    %456 = arith.addf %449, %455 : vector<1x128xf32>
    %457 = tpu.concatenate %57, %114, %171, %228, %285, %342, %399, %456 in 0 : vector<1x128xf32>, vector<1x128xf32>, vector<1x128xf32>, vector<1x128xf32>, vector<1x128xf32>, vector<1x128xf32>, vector<1x128xf32>, vector<1x128xf32> -> vector<8x128xf32>
    %cst_183 = arith.constant 1.250000e-01 : f32
    %458 = vector.broadcast %cst_183 : f32 to vector<8x128xf32>
    %459 = arith.mulf %457, %458 : vector<8x128xf32>
    %460 = arith.mulf %459, %459 : vector<8x128xf32>
    %cst_184 = arith.constant dense<0.000000e+00> : vector<8xf32>
    %461 = vector.multi_reduction <add>, %460, %cst_184 [1] : vector<8x128xf32> to vector<8xf32>
    %462 = vector.shape_cast %461 : vector<8xf32> to vector<8x1xf32>
    %cst_185 = arith.constant 9.99999996E-13 : f32
    %463 = vector.broadcast %cst_185 : f32 to vector<8x1xf32>
    %464 = arith.addf %462, %463 : vector<8x1xf32>
    %465 = math.rsqrt %464 : vector<8x1xf32>
    %466 = vector.broadcast %465 : vector<8x1xf32> to vector<8x128xf32>
    %467 = arith.mulf %459, %466 : vector<8x128xf32>
    %c0_186 = arith.constant 0 : index
    %c0_187 = arith.constant 0 : index
    %468 = vector.load %arg3[%c0_186, %c0_187] : memref<8x128xf32, #tpu.memory_space<vmem>>, vector<8x128xf32>
    tpu.vector_store %arg3[%c0_186, %c0_187], %467 {strides = array<i32>} : memref<8x128xf32, #tpu.memory_space<vmem>>, vector<8x128xf32>,
    return
  }
  func.func @transform_0(%arg0: i32, %arg1: memref<64xi32, #tpu.memory_space<smem>>) -> (i32, i32) {
    %c0_i32 = arith.constant 0 : i32
    %c0_i32_0 = arith.constant 0 : i32
    %c0_i32_1 = arith.constant 0 : i32
    return %c0_i32, %c0_i32_0 : i32, i32
  }
  func.func @transform_1(%arg0: i32, %arg1: memref<64xi32, #tpu.memory_space<smem>>) -> (i32, i32) {
    %c0_i32 = arith.constant 0 : i32
    %c0_i32_0 = arith.constant 0 : i32
    return %arg0, %c0_i32 : i32, i32
  }
}

</mosaic_0001>

<llo_original>
// kernel: pallas_embed.1
$region0: #{pallas_embed.1}
  #allocation0 [shape = 'u32[]', space=smem, size = 0x4, offset = 0x4, fixed_abs, tag = 'smem constant byte address 0x4 - core index']
  #allocation1 [shape = 'u32[72,128]{1,0:T(1,128)}', space=vmem, size = 0x9000, scoped, tag = 'internal scratch']
  #allocation2 [shape = 's32[1]{0}', space=sflag, size = 0x4, scoped, tag = 'scoped memory for pallas_embed.1']
  #allocation3 [shape = 'u8[512]{0}', space=smem, size = 0x200, scoped, tag = 'prefetched SMEM operand 0']
  %s0 = inlined_call_operand.vmem [shape: s32[64], index: 0, kind: input, shape index: {}]
  %s1 = inlined_call_operand.hbm [shape: f32[256,128], index: 1, kind: input, shape index: {}]
  %s2 = inlined_call_operand.hbm [shape: f32[8,128], index: 2, kind: output, shape index: {}]
  %s3 = sld [smem:[#allocation0]]
  $region18: #{pallas_embed.1} parent=0
    _
  %s5 = ssub.s32 1, %s3
  %s6 = scalar_select 0, %s5, %s3
  %s8 = sshll.u32 %s0, 4
  %s9 = int_to_ptr.vmem [resolvable:$true] %s8
  %11 = dma.vmem_to_smem %s9, 16, [#allocation3], [#allocation2]
  %13 = dma.done [#allocation2], 16
  %14 = sfence
  $region1: #{pallas_embed.1} parent=0
    #allocation4 [shape = 'u8[131072]{0}', space=vmem, size = 0x20000, scoped, tag = 'input window, operand 1, single buffered']
    #allocation5 [shape = 's32[1]{0}', space=sflag, size = 0x4, scoped, tag = 'scoped memory for pallas_embed.1']
    #allocation6 [shape = 's32[1]{0}', space=sflag, size = 0x4, scoped, tag = 'scoped memory for pallas_embed.1']
    #allocation7 [shape = 'u8[4096]{0}', space=vmem, size = 0x1000, scoped, tag = 'output window, operand 0, single buffered']
    %15 = vsyncpa [#allocation5], 0
    %16 = vsyncpa [#allocation6], 0
    // Predicated region
    $region2: #{pallas_embed.1} parent=1 // pred_check
      _
    $region3: #{pallas_embed.1} parent=1 // pred_check_branch
      %18 = sbr.rel (0) target = $region5
    $region4: #{pallas_embed.1} parent=1 // pred_region
      %20 = vsyncadd [#allocation5], 0
      %s21 = sshll.u32 %s1, 4
      %s22 = int_to_ptr.hbm [resolvable:$true] %s21
      %s23 = sshll.u32 [#allocation4], 4
      %s24 = int_to_ptr.vmem [resolvable:$true] %s23
      %29 = dma.hbm_to_vmem [thread:$0]  %s22, 4096, %s24, [#allocation5], 128, 128, 8
    $region5: #{pallas_embed.1} parent=1 // pred_fallthru
      _
    // Predicated region
    $region6: #{pallas_embed.1} parent=1 // pred_check
      _
    $region7: #{pallas_embed.1} parent=1 // pred_check_branch
      %31 = sbr.rel (0) target = $region9
    $region8: #{pallas_embed.1} parent=1 // pred_region
      %33 = dma.done [#allocation5], 4096
    $region9: #{pallas_embed.1} parent=1 // pred_fallthru
      _
    %s34 = smul.u32 0, 64
    %s35 = sld [smem:[#allocation3 + %s34]]
    %s36 = scalar_lea.vmem [#allocation4], %s35
    %v37 = vld [vmem:[%s36] sm:$0x1]
    %v38 = vadd.f32 %v37, 0.0
    %s39 = sadd.s32 %s34, 1
    %s40 = sld [smem:[#allocation3 + %s39]]
    %s41 = scalar_lea.vmem [#allocation4], %s40
    %v42 = vld [vmem:[%s41] sm:$0x1]
    %v43 = vadd.f32 %v38, %v42
    %s44 = sadd.s32 %s34, 2
    %s45 = sld [smem:[#allocation3 + %s44]]
    %s46 = scalar_lea.vmem [#allocation4], %s45
    %v47 = vld [vmem:[%s46] sm:$0x1]
    %v48 = vadd.f32 %v43, %v47
    %s49 = sadd.s32 %s34, 3
    %s50 = sld [smem:[#allocation3 + %s49]]
    %s51 = scalar_lea.vmem [#allocation4], %s50
    %v52 = vld [vmem:[%s51] sm:$0x1]
    %v53 = vadd.f32 %v48, %v52
    %s54 = sadd.s32 %s34, 4
    %s55 = sld [smem:[#allocation3 + %s54]]
    %s56 = scalar_lea.vmem [#allocation4], %s55
    %v57 = vld [vmem:[%s56] sm:$0x1]
    %v58 = vadd.f32 %v53, %v57
    %s59 = sadd.s32 %s34, 5
    %s60 = sld [smem:[#allocation3 + %s59]]
    %s61 = scalar_lea.vmem [#allocation4], %s60
    %v62 = vld [vmem:[%s61] sm:$0x1]
    %v63 = vadd.f32 %v58, %v62
    %s64 = sadd.s32 %s34, 6
    %s65 = sld [smem:[#allocation3 + %s64]]
    %s66 = scalar_lea.vmem [#allocation4], %s65
    %v67 = vld [vmem:[%s66] sm:$0x1]
    %v68 = vadd.f32 %v63, %v67
    %s69 = sadd.s32 %s34, 7
    %s70 = sld [smem:[#allocation3 + %s69]]
    %s71 = scalar_lea.vmem [#allocation4], %s70
    %v72 = vld [vmem:[%s71] sm:$0x1]
    %v73 = vadd.f32 %v68, %v72
    %s74 = sadd.s32 %s34, 8
    %s75 = sld [smem:[#allocation3 + %s74]]
    %s76 = scalar_lea.vmem [#allocation4], %s75
    %v77 = vld [vmem:[%s76] sm:$0x1]
    %v78 = vadd.f32 %v77, 0.0
    %s79 = sadd.s32 %s34, 9
    %s80 = sld [smem:[#allocation3 + %s79]]
    %s81 = scalar_lea.vmem [#allocation4], %s80
    %v82 = vld [vmem:[%s81] sm:$0x1]
    %v83 = vadd.f32 %v78, %v82
    %s84 = sadd.s32 %s34, 10
    %s85 = sld [smem:[#allocation3 + %s84]]
    %s86 = scalar_lea.vmem [#allocation4], %s85
    %v87 = vld [vmem:[%s86] sm:$0x1]
    %v88 = vadd.f32 %v83, %v87
    %s89 = sadd.s32 %s34, 11
    %s90 = sld [smem:[#allocation3 + %s89]]
    %s91 = scalar_lea.vmem [#allocation4], %s90
    %v92 = vld [vmem:[%s91] sm:$0x1]
    %v93 = vadd.f32 %v88, %v92
    %s94 = sadd.s32 %s34, 12
    %s95 = sld [smem:[#allocation3 + %s94]]
    %s96 = scalar_lea.vmem [#allocation4], %s95
    %v97 = vld [vmem:[%s96] sm:$0x1]
    %v98 = vadd.f32 %v93, %v97
    %s99 = sadd.s32 %s34, 13
    %s100 = sld [smem:[#allocation3 + %s99]]
    %s101 = scalar_lea.vmem [#allocation4], %s100
    %v102 = vld [vmem:[%s101] sm:$0x1]
    %v103 = vadd.f32 %v98, %v102
    %s104 = sadd.s32 %s34, 14
    %s105 = sld [smem:[#allocation3 + %s104]]
    %s106 = scalar_lea.vmem [#allocation4], %s105
    %v107 = vld [vmem:[%s106] sm:$0x1]
    %v108 = vadd.f32 %v103, %v107
    %s109 = sadd.s32 %s34, 15
    %s110 = sld [smem:[#allocation3 + %s109]]
    %s111 = scalar_lea.vmem [#allocation4], %s110
    %v112 = vld [vmem:[%s111] sm:$0x1]
    %v113 = vadd.f32 %v108, %v112
    %s114 = sadd.s32 %s34, 16
    %s115 = sld [smem:[#allocation3 + %s114]]
    %s116 = scalar_lea.vmem [#allocation4], %s115
    %v117 = vld [vmem:[%s116] sm:$0x1]
    %v118 = vadd.f32 %v117, 0.0
    %s119 = sadd.s32 %s34, 17
    %s120 = sld [smem:[#allocation3 + %s119]]
    %s121 = scalar_lea.vmem [#allocation4], %s120
    %v122 = vld [vmem:[%s121] sm:$0x1]
    %v123 = vadd.f32 %v118, %v122
    %s124 = sadd.s32 %s34, 18
    %s125 = sld [smem:[#allocation3 + %s124]]
    %s126 = scalar_lea.vmem [#allocation4], %s125
    %v127 = vld [vmem:[%s126] sm:$0x1]
    %v128 = vadd.f32 %v123, %v127
    %s129 = sadd.s32 %s34, 19
    %s130 = sld [smem:[#allocation3 + %s129]]
    %s131 = scalar_lea.vmem [#allocation4], %s130
    %v132 = vld [vmem:[%s131] sm:$0x1]
    %v133 = vadd.f32 %v128, %v132
    %s134 = sadd.s32 %s34, 20
    %s135 = sld [smem:[#allocation3 + %s134]]
    %s136 = scalar_lea.vmem [#allocation4], %s135
    %v137 = vld [vmem:[%s136] sm:$0x1]
    %v138 = vadd.f32 %v133, %v137
    %s139 = sadd.s32 %s34, 21
    %s140 = sld [smem:[#allocation3 + %s139]]
    %s141 = scalar_lea.vmem [#allocation4], %s140
    %v142 = vld [vmem:[%s141] sm:$0x1]
    %v143 = vadd.f32 %v138, %v142
    %s144 = sadd.s32 %s34, 22
    %s145 = sld [smem:[#allocation3 + %s144]]
    %s146 = scalar_lea.vmem [#allocation4], %s145
    %v147 = vld [vmem:[%s146] sm:$0x1]
    %v148 = vadd.f32 %v143, %v147
    %s149 = sadd.s32 %s34, 23
    %s150 = sld [smem:[#allocation3 + %s149]]
    %s151 = scalar_lea.vmem [#allocation4], %s150
    %v152 = vld [vmem:[%s151] sm:$0x1]
    %v153 = vadd.f32 %v148, %v152
    %s154 = sadd.s32 %s34, 24
    %s155 = sld [smem:[#allocation3 + %s154]]
    %s156 = scalar_lea.vmem [#allocation4], %s155
    %v157 = vld [vmem:[%s156] sm:$0x1]
    %v158 = vadd.f32 %v157, 0.0
    %s159 = sadd.s32 %s34, 25
    %s160 = sld [smem:[#allocation3 + %s159]]
    %s161 = scalar_lea.vmem [#allocation4], %s160
    %v162 = vld [vmem:[%s161] sm:$0x1]
    %v163 = vadd.f32 %v158, %v162
    %s164 = sadd.s32 %s34, 26
    %s165 = sld [smem:[#allocation3 + %s164]]
    %s166 = scalar_lea.vmem [#allocation4], %s165
    %v167 = vld [vmem:[%s166] sm:$0x1]
    %v168 = vadd.f32 %v163, %v167
    %s169 = sadd.s32 %s34, 27
    %s170 = sld [smem:[#allocation3 + %s169]]
    %s171 = scalar_lea.vmem [#allocation4], %s170
    %v172 = vld [vmem:[%s171] sm:$0x1]
    %v173 = vadd.f32 %v168, %v172
    %s174 = sadd.s32 %s34, 28
    %s175 = sld [smem:[#allocation3 + %s174]]
    %s176 = scalar_lea.vmem [#allocation4], %s175
    %v177 = vld [vmem:[%s176] sm:$0x1]
    %v178 = vadd.f32 %v173, %v177
    %s179 = sadd.s32 %s34, 29
    %s180 = sld [smem:[#allocation3 + %s179]]
    %s181 = scalar_lea.vmem [#allocation4], %s180
    %v182 = vld [vmem:[%s181] sm:$0x1]
    %v183 = vadd.f32 %v178, %v182
    %s184 = sadd.s32 %s34, 30
    %s185 = sld [smem:[#allocation3 + %s184]]
    %s186 = scalar_lea.vmem [#allocation4], %s185
    %v187 = vld [vmem:[%s186] sm:$0x1]
    %v188 = vadd.f32 %v183, %v187
    %s189 = sadd.s32 %s34, 31
    %s190 = sld [smem:[#allocation3 + %s189]]
    %s191 = scalar_lea.vmem [#allocation4], %s190
    %v192 = vld [vmem:[%s191] sm:$0x1]
    %v193 = vadd.f32 %v188, %v192
    %s194 = sadd.s32 %s34, 32
    %s195 = sld [smem:[#allocation3 + %s194]]
    %s196 = scalar_lea.vmem [#allocation4], %s195
    %v197 = vld [vmem:[%s196] sm:$0x1]
    %v198 = vadd.f32 %v197, 0.0
    %s199 = sadd.s32 %s34, 33
    %s200 = sld [smem:[#allocation3 + %s199]]
    %s201 = scalar_lea.vmem [#allocation4], %s200
    %v202 = vld [vmem:[%s201] sm:$0x1]
    %v203 = vadd.f32 %v198, %v202
    %s204 = sadd.s32 %s34, 34
    %s205 = sld [smem:[#allocation3 + %s204]]
    %s206 = scalar_lea.vmem [#allocation4], %s205
    %v207 = vld [vmem:[%s206] sm:$0x1]
    %v208 = vadd.f32 %v203, %v207
    %s209 = sadd.s32 %s34, 35
    %s210 = sld [smem:[#allocation3 + %s209]]
    %s211 = scalar_lea.vmem [#allocation4], %s210
    %v212 = vld [vmem:[%s211] sm:$0x1]
    %v213 = vadd.f32 %v208, %v212
    %s214 = sadd.s32 %s34, 36
    %s215 = sld [smem:[#allocation3 + %s214]]
    %s216 = scalar_lea.vmem [#allocation4], %s215
    %v217 = vld [vmem:[%s216] sm:$0x1]
    %v218 = vadd.f32 %v213, %v217
    %s219 = sadd.s32 %s34, 37
    %s220 = sld [smem:[#allocation3 + %s219]]
    %s221 = scalar_lea.vmem [#allocation4], %s220
    %v222 = vld [vmem:[%s221] sm:$0x1]
    %v223 = vadd.f32 %v218, %v222
    %s224 = sadd.s32 %s34, 38
    %s225 = sld [smem:[#allocation3 + %s224]]
    %s226 = scalar_lea.vmem [#allocation4], %s225
    %v227 = vld [vmem:[%s226] sm:$0x1]
    %v228 = vadd.f32 %v223, %v227
    %s229 = sadd.s32 %s34, 39
    %s230 = sld [smem:[#allocation3 + %s229]]
    %s231 = scalar_lea.vmem [#allocation4], %s230
    %v232 = vld [vmem:[%s231] sm:$0x1]
    %v233 = vadd.f32 %v228, %v232
    %s234 = sadd.s32 %s34, 40
    %s235 = sld [smem:[#allocation3 + %s234]]
    %s236 = scalar_lea.vmem [#allocation4], %s235
    %v237 = vld [vmem:[%s236] sm:$0x1]
    %v238 = vadd.f32 %v237, 0.0
    %s239 = sadd.s32 %s34, 41
    %s240 = sld [smem:[#allocation3 + %s239]]
    %s241 = scalar_lea.vmem [#allocation4], %s240
    %v242 = vld [vmem:[%s241] sm:$0x1]
    %v243 = vadd.f32 %v238, %v242
    %s244 = sadd.s32 %s34, 42
    %s245 = sld [smem:[#allocation3 + %s244]]
    %s246 = scalar_lea.vmem [#allocation4], %s245
    %v247 = vld [vmem:[%s246] sm:$0x1]
    %v248 = vadd.f32 %v243, %v247
    %s249 = sadd.s32 %s34, 43
    %s250 = sld [smem:[#allocation3 + %s249]]
    %s251 = scalar_lea.vmem [#allocation4], %s250
    %v252 = vld [vmem:[%s251] sm:$0x1]
    %v253 = vadd.f32 %v248, %v252
    %s254 = sadd.s32 %s34, 44
    %s255 = sld [smem:[#allocation3 + %s254]]
    %s256 = scalar_lea.vmem [#allocation4], %s255
    %v257 = vld [vmem:[%s256] sm:$0x1]
    %v258 = vadd.f32 %v253, %v257
    %s259 = sadd.s32 %s34, 45
    %s260 = sld [smem:[#allocation3 + %s259]]
    %s261 = scalar_lea.vmem [#allocation4], %s260
    %v262 = vld [vmem:[%s261] sm:$0x1]
    %v263 = vadd.f32 %v258, %v262
    %s264 = sadd.s32 %s34, 46
    %s265 = sld [smem:[#allocation3 + %s264]]
    %s266 = scalar_lea.vmem [#allocation4], %s265
    %v267 = vld [vmem:[%s266] sm:$0x1]
    %v268 = vadd.f32 %v263, %v267
    %s269 = sadd.s32 %s34, 47
    %s270 = sld [smem:[#allocation3 + %s269]]
    %s271 = scalar_lea.vmem [#allocation4], %s270
    %v272 = vld [vmem:[%s271] sm:$0x1]
    %v273 = vadd.f32 %v268, %v272
    %s274 = sadd.s32 %s34, 48
    %s275 = sld [smem:[#allocation3 + %s274]]
    %s276 = scalar_lea.vmem [#allocation4], %s275
    %v277 = vld [vmem:[%s276] sm:$0x1]
    %v278 = vadd.f32 %v277, 0.0
    %s279 = sadd.s32 %s34, 49
    %s280 = sld [smem:[#allocation3 + %s279]]
    %s281 = scalar_lea.vmem [#allocation4], %s280
    %v282 = vld [vmem:[%s281] sm:$0x1]
    %v283 = vadd.f32 %v278, %v282
    %s284 = sadd.s32 %s34, 50
    %s285 = sld [smem:[#allocation3 + %s284]]
    %s286 = scalar_lea.vmem [#allocation4], %s285
    %v287 = vld [vmem:[%s286] sm:$0x1]
    %v288 = vadd.f32 %v283, %v287
    %s289 = sadd.s32 %s34, 51
    %s290 = sld [smem:[#allocation3 + %s289]]
    %s291 = scalar_lea.vmem [#allocation4], %s290
    %v292 = vld [vmem:[%s291] sm:$0x1]
    %v293 = vadd.f32 %v288, %v292
    %s294 = sadd.s32 %s34, 52
    %s295 = sld [smem:[#allocation3 + %s294]]
    %s296 = scalar_lea.vmem [#allocation4], %s295
    %v297 = vld [vmem:[%s296] sm:$0x1]
    %v298 = vadd.f32 %v293, %v297
    %s299 = sadd.s32 %s34, 53
    %s300 = sld [smem:[#allocation3 + %s299]]
    %s301 = scalar_lea.vmem [#allocation4], %s300
    %v302 = vld [vmem:[%s301] sm:$0x1]
    %v303 = vadd.f32 %v298, %v302
    %s304 = sadd.s32 %s34, 54
    %s305 = sld [smem:[#allocation3 + %s304]]
    %s306 = scalar_lea.vmem [#allocation4], %s305
    %v307 = vld [vmem:[%s306] sm:$0x1]
    %v308 = vadd.f32 %v303, %v307
    %s309 = sadd.s32 %s34, 55
    %s310 = sld [smem:[#allocation3 + %s309]]
    %s311 = scalar_lea.vmem [#allocation4], %s310
    %v312 = vld [vmem:[%s311] sm:$0x1]
    %v313 = vadd.f32 %v308, %v312
    %s314 = sadd.s32 %s34, 56
    %s315 = sld [smem:[#allocation3 + %s314]]
    %s316 = scalar_lea.vmem [#allocation4], %s315
    %v317 = vld [vmem:[%s316] sm:$0x1]
    %v318 = vadd.f32 %v317, 0.0
    %s319 = sadd.s32 %s34, 57
    %s320 = sld [smem:[#allocation3 + %s319]]
    %s321 = scalar_lea.vmem [#allocation4], %s320
    %v322 = vld [vmem:[%s321] sm:$0x1]
    %v323 = vadd.f32 %v318, %v322
    %s324 = sadd.s32 %s34, 58
    %s325 = sld [smem:[#allocation3 + %s324]]
    %s326 = scalar_lea.vmem [#allocation4], %s325
    %v327 = vld [vmem:[%s326] sm:$0x1]
    %v328 = vadd.f32 %v323, %v327
    %s329 = sadd.s32 %s34, 59
    %s330 = sld [smem:[#allocation3 + %s329]]
    %s331 = scalar_lea.vmem [#allocation4], %s330
    %v332 = vld [vmem:[%s331] sm:$0x1]
    %v333 = vadd.f32 %v328, %v332
    %s334 = sadd.s32 %s34, 60
    %s335 = sld [smem:[#allocation3 + %s334]]
    %s336 = scalar_lea.vmem [#allocation4], %s335
    %v337 = vld [vmem:[%s336] sm:$0x1]
    %v338 = vadd.f32 %v333, %v337
    %s339 = sadd.s32 %s34, 61
    %s340 = sld [smem:[#allocation3 + %s339]]
    %s341 = scalar_lea.vmem [#allocation4], %s340
    %v342 = vld [vmem:[%s341] sm:$0x1]
    %v343 = vadd.f32 %v338, %v342
    %s344 = sadd.s32 %s34, 62
    %s345 = sld [smem:[#allocation3 + %s344]]
    %s346 = scalar_lea.vmem [#allocation4], %s345
    %v347 = vld [vmem:[%s346] sm:$0x1]
    %v348 = vadd.f32 %v343, %v347
    %s349 = sadd.s32 %s34, 63
    %s350 = sld [smem:[#allocation3 + %s349]]
    %s351 = scalar_lea.vmem [#allocation4], %s350
    %v352 = vld [vmem:[%s351] sm:$0x1]
    %v353 = vadd.f32 %v348, %v352
    %v355 = vrot.slane %v113, 7
    %v358 = vrot.slane %v153, 6
    %v361 = vrot.slane %v193, 5
    %v364 = vrot.slane %v233, 4
    %v367 = vrot.slane %v273, 3
    %v370 = vrot.slane %v313, 2
    %v373 = vrot.slane %v353, 1
    %vm375 = vcmask 1040384
    %v376 = vsel %vm375, %v73, %v355
    %vm377 = vcmask 1041408
    %v378 = vsel %vm377, %v376, %v358
    %vm379 = vcmask 1042432
    %v380 = vsel %vm379, %v378, %v361
    %vm381 = vcmask 1043456
    %v382 = vsel %vm381, %v380, %v364
    %vm383 = vcmask 1044480
    %v384 = vsel %vm383, %v382, %v367
    %vm385 = vcmask 1045504
    %v386 = vsel %vm385, %v384, %v370
    %vm387 = vcmask 1046528
    %v388 = vsel %vm387, %v386, %v373
    %v389 = vmul.f32 %v388, 0.125
    %v390 = vmul.f32 %v389, %v389
    %391 = vadd.xlane.f32.xlu0 %v390
    %v392 = vpop.xlane.xlu0 %391
    %v393 = vadd.f32 %v392, 1e-12
    %v394 = vrsqrt.pop %v393
    %v395 = vmul.f32 %v394, %v393
    %v396 = vmul.f32 %v395, %v394
    %v397 = vmul.f32 0.5, %v396
    %v398 = vsub.f32 1.5, %v397
    %v399 = vmul.f32 %v394, %v398
    %vm400 = vweird.f32 %v393
    %vm401 = vweird.f32 %v394
    %vm402 = vmor %vm400, %vm401
    %v403 = vsel %vm402, %v394, %v399
    %v404 = vmul.f32 %v389, %v403
    %405 = vst [vmem:[#allocation7] sm:$0xff] %v404
    // Predicated region
    $region10: #{pallas_embed.1} parent=1 // pred_check
      _
    $region11: #{pallas_embed.1} parent=1 // pred_check_branch
      %407 = sbr.rel (0) target = $region13
    $region12: #{pallas_embed.1} parent=1 // pred_region
      %409 = vsyncadd [#allocation6], 0
      %s411 = sshll.u32 [#allocation7], 4
      %s412 = int_to_ptr.vmem [resolvable:$true] %s411
      %s413 = sshll.u32 %s2, 4
      %s414 = int_to_ptr.hbm [resolvable:$true] %s413
      %416 = dma.vmem_to_hbm [thread:$0]  %s412, 128, %s414, [#allocation6]
    $region13: #{pallas_embed.1} parent=1 // pred_fallthru
      _
    // Predicated region
    $region14: #{pallas_embed.1} parent=1 // pred_check
      _
    $region15: #{pallas_embed.1} parent=1 // pred_check_branch
      %418 = sbr.rel (0) target = $region17
    $region16: #{pallas_embed.1} parent=1 // pred_region
      %420 = dma.done [#allocation6], 128
    $region17: #{pallas_embed.1} parent=1 // pred_fallthru
      _
    %421 = vsyncpa [#allocation5], 1
    %422 = vsyncpa [#allocation6], 1

</llo_original>
